<compile_context>
chip_gen: v7x
topology: tpu7x:2x2x1
jax: 0.10.0
libtpu: 0.0.40
codegen_flags: <defaults>
</compile_context>

<pallas_src>
import functools

import jax
import jax.numpy as jnp
from jax.experimental import pallas as pl
from jax.experimental.pallas import tpu as pltpu


# ---------------------------------------------------------------------------
# Fused Pallas kernel: entire MLP forward in VMEM (all f32)
# ---------------------------------------------------------------------------
def _fused_mlp_kernel(x_ref, *refs, n_layers):
    """refs = (w0, b0, w1, b1, ..., w_{L-1}, b_{L-1}, o_ref).

    All layers except the last: y = relu(h @ W + b)   (dropout = identity, eval)
    Last layer:                 y = log_softmax(h @ W + b)
    Only the final (batch_tile, nclass) block is written back.
    """
    o_ref = refs[-1]
    wb = refs[:-1]

    h = x_ref[...]
    for l in range(n_layers):          # static Python unroll at trace time
        w = wb[2 * l][...]
        b = wb[2 * l + 1][...]         # (1, out) -> broadcasts over batch
        y = jnp.dot(h, w, preferred_element_type=jnp.float32) + b
        if l < n_layers - 1:
            h = jnp.maximum(y, 0.0)    # ReLU (+ Dropout -> identity in eval)
        else:
            # numerically stable log-softmax over the class (last) axis
            m = jnp.max(y, axis=-1, keepdims=True)
            s = y - m
            lse = jnp.log(jnp.sum(jnp.exp(s), axis=-1, keepdims=True))
            h = s - lse

    o_ref[...] = h.astype(o_ref.dtype)


# ---------------------------------------------------------------------------
# Wrapper: tiling / grid / VMEM-limit policy
# ---------------------------------------------------------------------------
def _choose_batch_tile(B, max_batch_tile):
    """Pick a batch tile: multiple of 8, as large as possible (fewer grid
    steps -> less per-step overhead), but with >=2 grid steps when the batch
    allows it so the 'parallel' axis shards across both TCs on v7x."""
    if B <= 8:
        return B                        # full-array block (always legal)
    bt = max(8, min(max_batch_tile, (B // 8) * 8))
    if pl.cdiv(B, bt) < 2:
        half = ((-(-B // 2)) + 7) // 8 * 8
        bt = max(8, min(bt, half))
    return bt


def _vmem_bytes_estimate(bt, nfeat, layers, nclass):
    total = 2 * bt * nfeat * 4          # double-buffered input tiles
    total += 2 * bt * nclass * 4        # double-buffered output tiles
    widths = [nfeat]
    for w, b in layers:
        total += 4 * (w.size + b.size)  # VMEM-resident parameters (f32)
        widths.append(w.shape[1])
    total += 3 * bt * max(widths) * 4   # f32 activation working-set headroom
    return int(total)


def fused_mlp_forward(x, layers, *, max_batch_tile=2048):
    """Run the whole MLP in one pallas_call.

    layers: list of (W[in,out], b[1,out]) f32 pairs; ReLU on all but last,
            log_softmax on the last.
    """
    B, nfeat = x.shape
    n_layers = len(layers)
    nclass = layers[-1][0].shape[1]

    bt = _choose_batch_tile(B, max_batch_tile)
    # Ragged last block is handled by Pallas: OOB reads are padded, OOB
    # writes are masked. No jnp.pad / out[:B] HBM copies needed.
    grid = (pl.cdiv(B, bt),)

    vmem = pltpu.MemorySpace.VMEM

    # Activation block varies with the batch-grid index; weights/biases use a
    # constant index_map so they are fetched once and stay VMEM-resident.
    in_specs = [pl.BlockSpec((bt, nfeat), lambda i: (i, 0), memory_space=vmem)]
    args = [x]
    for w, b in layers:
        in_specs.append(pl.BlockSpec(w.shape, lambda i: (0, 0), memory_space=vmem))
        in_specs.append(pl.BlockSpec(b.shape, lambda i: (0, 0), memory_space=vmem))
        args.append(w)
        args.append(b)

    # Explicit scoped-VMEM limit: v5e defaults to 16 MiB; give generous but
    # bounded headroom (everything here is a few MiB even at bt=8192).
    vmem_limit = int(min(64 * 1024 * 1024,
                         max(32 * 1024 * 1024,
                             2 * _vmem_bytes_estimate(bt, nfeat, layers, nclass))))

    kernel = functools.partial(_fused_mlp_kernel, n_layers=n_layers)

    return pl.pallas_call(
        kernel,
        out_shape=jax.ShapeDtypeStruct((B, nclass), jnp.float32),
        grid=grid,
        in_specs=in_specs,
        out_specs=pl.BlockSpec((bt, nclass), lambda i: (i, 0), memory_space=vmem),
        compiler_params=pltpu.CompilerParams(
            dimension_semantics=("parallel",),   # dual-TC sharding on v7x
            vmem_limit_bytes=vmem_limit,
        ),
    )(*args)


# ---------------------------------------------------------------------------
# Model: parameter init + forward
# ---------------------------------------------------------------------------
def init_vanilla_params(key, nfeat, nhids, nclass):
    """Deterministic synthetic parameters (InfoFair uses simple Linear stacks).

    Biases are stored pre-reshaped as (1, out) so no per-call reshape is needed.
    """
    params = {"feature_extractor": [], "classifier": []}

    # FeatureExtractor: Linear -> ReLU (-> Dropout) per hidden dim
    in_dim = nfeat
    for h in nhids["feature_extractor"]:
        key, kw, kb = jax.random.split(key, 3)
        scale = 1.0 / jnp.sqrt(in_dim)
        w = jax.random.uniform(kw, (in_dim, h), jnp.float32, -scale, scale)
        bias = jax.random.uniform(kb, (1, h), jnp.float32, -scale, scale)
        params["feature_extractor"].append((w, bias))
        in_dim = h

    # CLF: hidden Linear -> ReLU layers, then final Linear -> log_softmax
    clf_in = in_dim if len(nhids["feature_extractor"]) > 0 else nfeat
    for h in nhids["classifier"] + [nclass]:
        key, kw, kb = jax.random.split(key, 3)
        scale = 1.0 / jnp.sqrt(clf_in)
        w = jax.random.uniform(kw, (clf_in, h), jnp.float32, -scale, scale)
        bias = jax.random.uniform(kb, (1, h), jnp.float32, -scale, scale)
        params["classifier"].append((w, bias))
        clf_in = h

    return params


def vanilla_forward(params, x):
    """emb = feature_extractor(x); class_log_prob = target_predictor(emb).

    The whole stack is executed inside one fused Pallas kernel.
    """
    # TODO(synk): dropout is identity here (inference mode); training-mode
    # dropout would need pltpu.prng_random_bits masking inside the kernel.
    layers = list(params["feature_extractor"]) + list(params["classifier"])
    return fused_mlp_forward(x, layers)


def _reference_forward(params, x):
    """Pure-JAX reference of the same computation (for correctness check)."""
    layers = list(params["feature_extractor"]) + list(params["classifier"])
    h = x
    for i, (w, b) in enumerate(layers):
        y = jnp.dot(h, w, precision=jax.lax.Precision.HIGHEST) + b
        if i < len(layers) - 1:
            h = jnp.maximum(y, 0.0)
        else:
            h = jax.nn.log_softmax(y, axis=-1)
    return h


# ---------------------------------------------------------------------------
# Main
# ---------------------------------------------------------------------------
if __name__ == "__main__":
    key = jax.random.PRNGKey(0)

    batch = 8
    nfeat = 32
    nhids = {"feature_extractor": [64, 32], "classifier": [16]}
    nclass = 4
    droprate = 0.5  # eval-mode -> identity

    key, kx, kp = jax.random.split(key, 3)
    x = jax.random.normal(kx, (batch, nfeat), jnp.float32)
    params = init_vanilla_params(kp, nfeat, nhids, nclass)

    out = vanilla_forward(params, x)
    out = jax.block_until_ready(out)

    assert out.shape == (batch, nclass)

    # log-probabilities sum (in prob space) to ~1 per row
    row_sums = jnp.sum(jnp.exp(out), axis=-1)
    assert bool(jnp.all(jnp.abs(row_sums - 1.0) < 1e-4))

    # match pure-JAX f32 reference of the same forward pass
    ref = _reference_forward(params, x)
    assert bool(jnp.all(jnp.abs(out - ref) < 1e-3))

    print("KERNEL_OK")
</pallas_src>

<mosaic_0001>
module attributes {stable_mosaic.version = 11 : i64} {
  func.func @_fused_mlp_kernel(%arg0: i32, %arg1: memref<8x32xf32, #tpu.memory_space<vmem>>, %arg2: memref<32x64xf32, #tpu.memory_space<vmem>>, %arg3: memref<1x64xf32, #tpu.memory_space<vmem>>, %arg4: memref<64x32xf32, #tpu.memory_space<vmem>>, %arg5: memref<1x32xf32, #tpu.memory_space<vmem>>, %arg6: memref<32x16xf32, #tpu.memory_space<vmem>>, %arg7: memref<1x16xf32, #tpu.memory_space<vmem>>, %arg8: memref<16x4xf32, #tpu.memory_space<vmem>>, %arg9: memref<1x4xf32, #tpu.memory_space<vmem>>, %arg10: memref<8x4xf32, #tpu.memory_space<vmem>>) attributes {dimension_semantics = [#tpu.dimension_semantics<parallel>], iteration_bounds = array<i64: 1>, scalar_prefetch = 0 : i64, scratch_operands = 0 : i64, tpu.core_type = #tpu.core_type<tc>, window_params = [{transform_indices = @transform_0, window_bounds = array<i64: 8, 32>}, {pipeline_mode = #tpu.pipeline_mode<synchronous>, transform_indices = @transform_1, window_bounds = array<i64: 32, 64>}, {pipeline_mode = #tpu.pipeline_mode<synchronous>, transform_indices = @transform_2, window_bounds = array<i64: 1, 64>}, {pipeline_mode = #tpu.pipeline_mode<synchronous>, transform_indices = @transform_3, window_bounds = array<i64: 64, 32>}, {pipeline_mode = #tpu.pipeline_mode<synchronous>, transform_indices = @transform_4, window_bounds = array<i64: 1, 32>}, {pipeline_mode = #tpu.pipeline_mode<synchronous>, transform_indices = @transform_5, window_bounds = array<i64: 32, 16>}, {pipeline_mode = #tpu.pipeline_mode<synchronous>, transform_indices = @transform_6, window_bounds = array<i64: 1, 16>}, {pipeline_mode = #tpu.pipeline_mode<synchronous>, transform_indices = @transform_7, window_bounds = array<i64: 16, 4>}, {pipeline_mode = #tpu.pipeline_mode<synchronous>, transform_indices = @transform_8, window_bounds = array<i64: 1, 4>}, {transform_indices = @transform_9, window_bounds = array<i64: 8, 4>}]} {
    %c0 = arith.constant 0 : index
    %c0_0 = arith.constant 0 : index
    %0 = vector.load %arg1[%c0, %c0_0] : memref<8x32xf32, #tpu.memory_space<vmem>>, vector<8x32xf32>
    %c0_1 = arith.constant 0 : index
    %c0_2 = arith.constant 0 : index
    %1 = vector.load %arg2[%c0_1, %c0_2] : memref<32x64xf32, #tpu.memory_space<vmem>>, vector<32x64xf32>
    %c0_3 = arith.constant 0 : index
    %c0_4 = arith.constant 0 : index
    %2 = vector.load %arg3[%c0_3, %c0_4] : memref<1x64xf32, #tpu.memory_space<vmem>>, vector<1x64xf32>
    %cst = arith.constant dense<0.000000e+00> : vector<8x64xf32>
    %3 = tpu.matmul %0, %1, %cst {dimension_numbers = #tpu.dot_dimension_numbers<[1], [0], [0], [1], [0, 0, 1, 1], [], []>} : vector<8x32xf32>, vector<32x64xf32>, vector<8x64xf32> -> vector<8x64xf32>
    %4 = vector.broadcast %2 : vector<1x64xf32> to vector<8x64xf32>
    %5 = arith.addf %3, %4 : vector<8x64xf32>
    %cst_5 = arith.constant 0.000000e+00 : f32
    %6 = vector.broadcast %cst_5 : f32 to vector<8x64xf32>
    %7 = arith.maximumf %5, %6 : vector<8x64xf32>
    %c0_6 = arith.constant 0 : index
    %c0_7 = arith.constant 0 : index
    %8 = vector.load %arg4[%c0_6, %c0_7] : memref<64x32xf32, #tpu.memory_space<vmem>>, vector<64x32xf32>
    %c0_8 = arith.constant 0 : index
    %c0_9 = arith.constant 0 : index
    %9 = vector.load %arg5[%c0_8, %c0_9] : memref<1x32xf32, #tpu.memory_space<vmem>>, vector<1x32xf32>
    %cst_10 = arith.constant dense<0.000000e+00> : vector<8x32xf32>
    %10 = tpu.matmul %7, %8, %cst_10 {dimension_numbers = #tpu.dot_dimension_numbers<[1], [0], [0], [1], [0, 0, 1, 1], [], []>} : vector<8x64xf32>, vector<64x32xf32>, vector<8x32xf32> -> vector<8x32xf32>
    %11 = vector.broadcast %9 : vector<1x32xf32> to vector<8x32xf32>
    %12 = arith.addf %10, %11 : vector<8x32xf32>
    %cst_11 = arith.constant 0.000000e+00 : f32
    %13 = vector.broadcast %cst_11 : f32 to vector<8x32xf32>
    %14 = arith.maximumf %12, %13 : vector<8x32xf32>
    %c0_12 = arith.constant 0 : index
    %c0_13 = arith.constant 0 : index
    %15 = vector.load %arg6[%c0_12, %c0_13] : memref<32x16xf32, #tpu.memory_space<vmem>>, vector<32x16xf32>
    %c0_14 = arith.constant 0 : index
    %c0_15 = arith.constant 0 : index
    %16 = vector.load %arg7[%c0_14, %c0_15] : memref<1x16xf32, #tpu.memory_space<vmem>>, vector<1x16xf32>
    %cst_16 = arith.constant dense<0.000000e+00> : vector<8x16xf32>
    %17 = tpu.matmul %14, %15, %cst_16 {dimension_numbers = #tpu.dot_dimension_numbers<[1], [0], [0], [1], [0, 0, 1, 1], [], []>} : vector<8x32xf32>, vector<32x16xf32>, vector<8x16xf32> -> vector<8x16xf32>
    %18 = vector.broadcast %16 : vector<1x16xf32> to vector<8x16xf32>
    %19 = arith.addf %17, %18 : vector<8x16xf32>
    %cst_17 = arith.constant 0.000000e+00 : f32
    %20 = vector.broadcast %cst_17 : f32 to vector<8x16xf32>
    %21 = arith.maximumf %19, %20 : vector<8x16xf32>
    %c0_18 = arith.constant 0 : index
    %c0_19 = arith.constant 0 : index
    %22 = vector.load %arg8[%c0_18, %c0_19] : memref<16x4xf32, #tpu.memory_space<vmem>>, vector<16x4xf32>
    %c0_20 = arith.constant 0 : index
    %c0_21 = arith.constant 0 : index
    %23 = vector.load %arg9[%c0_20, %c0_21] : memref<1x4xf32, #tpu.memory_space<vmem>>, vector<1x4xf32>
    %cst_22 = arith.constant dense<0.000000e+00> : vector<8x4xf32>
    %24 = tpu.matmul %21, %22, %cst_22 {dimension_numbers = #tpu.dot_dimension_numbers<[1], [0], [0], [1], [0, 0, 1, 1], [], []>} : vector<8x16xf32>, vector<16x4xf32>, vector<8x4xf32> -> vector<8x4xf32>
    %25 = vector.broadcast %23 : vector<1x4xf32> to vector<8x4xf32>
    %26 = arith.addf %24, %25 : vector<8x4xf32>
    %cst_23 = arith.constant dense<0xFF800000> : vector<8xf32>
    %27 = vector.multi_reduction <maximumf>, %26, %cst_23 [1] : vector<8x4xf32> to vector<8xf32>
    %28 = vector.shape_cast %27 : vector<8xf32> to vector<8x1xf32>
    %29 = vector.broadcast %28 : vector<8x1xf32> to vector<8x4xf32>
    %30 = arith.subf %26, %29 : vector<8x4xf32>
    %31 = math.exp %30 : vector<8x4xf32>
    %cst_24 = arith.constant dense<0.000000e+00> : vector<8xf32>
    %32 = vector.multi_reduction <add>, %31, %cst_24 [1] : vector<8x4xf32> to vector<8xf32>
    %33 = vector.shape_cast %32 : vector<8xf32> to vector<8x1xf32>
    %34 = math.log %33 : vector<8x1xf32>
    %35 = vector.broadcast %34 : vector<8x1xf32> to vector<8x4xf32>
    %36 = arith.subf %30, %35 : vector<8x4xf32>
    %c0_25 = arith.constant 0 : index
    %c0_26 = arith.constant 0 : index
    %37 = vector.load %arg10[%c0_25, %c0_26] : memref<8x4xf32, #tpu.memory_space<vmem>>, vector<8x4xf32>
    tpu.vector_store %arg10[%c0_25, %c0_26], %36 {strides = array<i32>} : memref<8x4xf32, #tpu.memory_space<vmem>>, vector<8x4xf32>,
    return
  }
  func.func @transform_0(%arg0: i32) -> (i32, i32) {
    %c0_i32 = arith.constant 0 : i32
    %c0_i32_0 = arith.constant 0 : i32
    return %arg0, %c0_i32 : i32, i32
  }
  func.func @transform_1(%arg0: i32) -> (i32, i32) {
    %c0_i32 = arith.constant 0 : i32
    %c0_i32_0 = arith.constant 0 : i32
    %c0_i32_1 = arith.constant 0 : i32
    return %c0_i32, %c0_i32_0 : i32, i32
  }
  func.func @transform_2(%arg0: i32) -> (i32, i32) {
    %c0_i32 = arith.constant 0 : i32
    %c0_i32_0 = arith.constant 0 : i32
    %c0_i32_1 = arith.constant 0 : i32
    return %c0_i32, %c0_i32_0 : i32, i32
  }
  func.func @transform_3(%arg0: i32) -> (i32, i32) {
    %c0_i32 = arith.constant 0 : i32
    %c0_i32_0 = arith.constant 0 : i32
    %c0_i32_1 = arith.constant 0 : i32
    return %c0_i32, %c0_i32_0 : i32, i32
  }
  func.func @transform_4(%arg0: i32) -> (i32, i32) {
    %c0_i32 = arith.constant 0 : i32
    %c0_i32_0 = arith.constant 0 : i32
    %c0_i32_1 = arith.constant 0 : i32
    return %c0_i32, %c0_i32_0 : i32, i32
  }
  func.func @transform_5(%arg0: i32) -> (i32, i32) {
    %c0_i32 = arith.constant 0 : i32
    %c0_i32_0 = arith.constant 0 : i32
    %c0_i32_1 = arith.constant 0 : i32
    return %c0_i32, %c0_i32_0 : i32, i32
  }
  func.func @transform_6(%arg0: i32) -> (i32, i32) {
    %c0_i32 = arith.constant 0 : i32
    %c0_i32_0 = arith.constant 0 : i32
    %c0_i32_1 = arith.constant 0 : i32
    return %c0_i32, %c0_i32_0 : i32, i32
  }
  func.func @transform_7(%arg0: i32) -> (i32, i32) {
    %c0_i32 = arith.constant 0 : i32
    %c0_i32_0 = arith.constant 0 : i32
    %c0_i32_1 = arith.constant 0 : i32
    return %c0_i32, %c0_i32_0 : i32, i32
  }
  func.func @transform_8(%arg0: i32) -> (i32, i32) {
    %c0_i32 = arith.constant 0 : i32
    %c0_i32_0 = arith.constant 0 : i32
    %c0_i32_1 = arith.constant 0 : i32
    return %c0_i32, %c0_i32_0 : i32, i32
  }
  func.func @transform_9(%arg0: i32) -> (i32, i32) {
    %c0_i32 = arith.constant 0 : i32
    %c0_i32_0 = arith.constant 0 : i32
    return %arg0, %c0_i32 : i32, i32
  }
}

</mosaic_0001>

<llo_original>
// kernel: tpu_custom_call.1
$region0: #{tpu_custom_call.1}
  #allocation0 [shape = 'u32[]', space=smem, size = 0x4, offset = 0x4, fixed_abs, tag = 'smem constant byte address 0x4 - core index']
  #allocation1 [shape = 'u32[144,128]{1,0:T(1,128)}', space=vmem, size = 0x12000, scoped, tag = 'internal scratch']
  %s0 = inlined_call_operand.vmem [shape: f32[8,32], index: 0, kind: input, shape index: {}]
  %s1 = inlined_call_operand.vmem [shape: f32[32,64], index: 1, kind: input, shape index: {}]
  %s2 = inlined_call_operand.vmem [shape: f32[1,64], index: 2, kind: input, shape index: {}]
  %s3 = inlined_call_operand.vmem [shape: f32[64,32], index: 3, kind: input, shape index: {}]
  %s4 = inlined_call_operand.vmem [shape: f32[1,32], index: 4, kind: input, shape index: {}]
  %s5 = inlined_call_operand.vmem [shape: f32[32,16], index: 5, kind: input, shape index: {}]
  %s6 = inlined_call_operand.vmem [shape: f32[1,16], index: 6, kind: input, shape index: {}]
  %s7 = inlined_call_operand.vmem [shape: f32[16,4], index: 7, kind: input, shape index: {}]
  %s8 = inlined_call_operand.vmem [shape: f32[1,4], index: 8, kind: input, shape index: {}]
  %s9 = inlined_call_operand.vmem [shape: f32[8,4], index: 9, kind: output, shape index: {}]
  %s10 = sld [smem:[#allocation0]]
  $region46: #{tpu_custom_call.1} parent=0
    _
  %s12 = ssub.s32 1, %s10
  %s13 = scalar_select 0, %s12, %s10
  // Predicated region
  $region2: #{tpu_custom_call.1} parent=0 // pred_check
    _
  $region3: #{tpu_custom_call.1} parent=0 // pred_check_branch
    %15 = sbr.rel (0) target = $region5
  $region4: #{tpu_custom_call.1} parent=0 // pred_region
    _
  $region5: #{tpu_custom_call.1} parent=0 // pred_fallthru
    _
  // Predicated region
  $region6: #{tpu_custom_call.1} parent=0 // pred_check
    _
  $region7: #{tpu_custom_call.1} parent=0 // pred_check_branch
    %17 = sbr.rel (0) target = $region9
  $region8: #{tpu_custom_call.1} parent=0 // pred_region
    _
  $region9: #{tpu_custom_call.1} parent=0 // pred_fallthru
    _
  // Predicated region
  $region10: #{tpu_custom_call.1} parent=0 // pred_check
    _
  $region11: #{tpu_custom_call.1} parent=0 // pred_check_branch
    %19 = sbr.rel (0) target = $region13
  $region12: #{tpu_custom_call.1} parent=0 // pred_region
    _
  $region13: #{tpu_custom_call.1} parent=0 // pred_fallthru
    _
  // Predicated region
  $region14: #{tpu_custom_call.1} parent=0 // pred_check
    _
  $region15: #{tpu_custom_call.1} parent=0 // pred_check_branch
    %21 = sbr.rel (0) target = $region17
  $region16: #{tpu_custom_call.1} parent=0 // pred_region
    _
  $region17: #{tpu_custom_call.1} parent=0 // pred_fallthru
    _
  // Predicated region
  $region18: #{tpu_custom_call.1} parent=0 // pred_check
    _
  $region19: #{tpu_custom_call.1} parent=0 // pred_check_branch
    %23 = sbr.rel (0) target = $region21
  $region20: #{tpu_custom_call.1} parent=0 // pred_region
    _
  $region21: #{tpu_custom_call.1} parent=0 // pred_fallthru
    _
  // Predicated region
  $region22: #{tpu_custom_call.1} parent=0 // pred_check
    _
  $region23: #{tpu_custom_call.1} parent=0 // pred_check_branch
    %25 = sbr.rel (0) target = $region25
  $region24: #{tpu_custom_call.1} parent=0 // pred_region
    _
  $region25: #{tpu_custom_call.1} parent=0 // pred_fallthru
    _
  // Predicated region
  $region26: #{tpu_custom_call.1} parent=0 // pred_check
    _
  $region27: #{tpu_custom_call.1} parent=0 // pred_check_branch
    %27 = sbr.rel (0) target = $region29
  $region28: #{tpu_custom_call.1} parent=0 // pred_region
    _
  $region29: #{tpu_custom_call.1} parent=0 // pred_fallthru
    _
  // Predicated region
  $region30: #{tpu_custom_call.1} parent=0 // pred_check
    _
  $region31: #{tpu_custom_call.1} parent=0 // pred_check_branch
    %29 = sbr.rel (0) target = $region33
  $region32: #{tpu_custom_call.1} parent=0 // pred_region
    _
  $region33: #{tpu_custom_call.1} parent=0 // pred_fallthru
    _
  // Predicated region
  $region34: #{tpu_custom_call.1} parent=0 // pred_check
    _
  $region35: #{tpu_custom_call.1} parent=0 // pred_check_branch
    %31 = sbr.rel (0) target = $region37
  $region36: #{tpu_custom_call.1} parent=0 // pred_region
    _
  $region37: #{tpu_custom_call.1} parent=0 // pred_fallthru
    _
  %v32 = vld [vmem:[%s0] sm:$0xff]
  %v33 = vld [vmem:[%s1] sm:$0xff]
  %v34 = vld [vmem:[%s1 + $0x8] sm:$0xff]
  %v35 = vld [vmem:[%s1 + $0x10] sm:$0xff]
  %v36 = vld [vmem:[%s1 + $0x18] sm:$0xff]
  %v37 = vld [vmem:[%s2] sm:$0x1]
  %v39 = vlaneseq
  %v40 = vshrl.u32 %v39, 7
  %v41 = vsub.s32 0, %v40
  %v42 = vrot.slane %v37, %v41
  %vm44 = vcmask 261120
  %v46 = vsel %vm44, %v32, 0
  %48 = vmatprep.subr.mxu0 0.0
  %49 = vmatpush1.msra.mxu0 %v33
  %50 = vmatprep.subr.mxu0 0.0
  %51 = vmatpush1.msra.mxu0 %v34
  %52 = vmatprep.subr.mxu0 0.0
  %53 = vmatpush1.msra.mxu0 %v35
  %54 = vmatprep.subr.mxu0 0.0
  %55 = vmatpush1.msra.mxu0 %v36
  %56 = vmatprep.subr.mxu0 0.0
  %57 = vmatpush1.msra.mxu0 0.0
  %58 = vmatprep.subr.mxu0 0.0
  %59 = vmatpush1.msra.mxu0 0.0
  %60 = vmatprep.subr.mxu0 0.0
  %61 = vmatpush1.msra.mxu0 0.0
  %62 = vmatprep.subr.mxu0 0.0
  %63 = vmatpush1.msra.mxu0 0.0
  %64 = vmatprep.subr.mxu0 0.0
  %65 = vmatpush1.msra.mxu0 0.0
  %66 = vmatprep.subr.mxu0 0.0
  %67 = vmatpush1.msra.mxu0 0.0
  %68 = vmatprep.subr.mxu0 0.0
  %69 = vmatpush1.msra.mxu0 0.0
  %70 = vmatprep.subr.mxu0 0.0
  %71 = vmatpush1.msra.mxu0 0.0
  %72 = vmatprep.subr.mxu0 0.0
  %73 = vmatpush1.msra.mxu0 0.0
  %74 = vmatprep.subr.mxu0 0.0
  %75 = vmatpush1.msra.mxu0 0.0
  %76 = vmatprep.subr.mxu0 0.0
  %77 = vmatpush1.msra.mxu0 0.0
  %78 = vmatprep.subr.mxu0 0.0
  %79 = vmatpush1.msra.mxu0 0.0
  %80 = vmatprep.subr.mxu0 0.0
  %81 = vmatpush1.msra.mxu0 0.0
  %82 = vmatprep.subr.mxu0 0.0
  %83 = vmatpush1.msra.mxu0 0.0
  %84 = vmatprep.subr.mxu0 0.0
  %85 = vmatpush1.msra.mxu0 0.0
  %86 = vmatprep.subr.mxu0 0.0
  %87 = vmatpush1.msra.mxu0 0.0
  %88 = vmatprep.subr.mxu0 0.0
  %89 = vmatpush1.msra.mxu0 0.0
  %90 = vmatprep.subr.mxu0 0.0
  %91 = vmatpush1.msra.mxu0 0.0
  %92 = vmatprep.subr.mxu0 0.0
  %93 = vmatpush1.msra.mxu0 0.0
  %94 = vmatprep.subr.mxu0 0.0
  %95 = vmatpush1.msra.mxu0 0.0
  %96 = vmatprep.subr.mxu0 0.0
  %97 = vmatpush1.msra.mxu0 0.0
  %98 = vmatprep.subr.mxu0 0.0
  %99 = vmatpush1.msra.mxu0 0.0
  %100 = vmatprep.subr.mxu0 0.0
  %101 = vmatpush1.msra.mxu0 0.0
  %102 = vmatprep.subr.mxu0 0.0
  %103 = vmatpush1.msra.mxu0 0.0
  %104 = vmatprep.subr.mxu0 0.0
  %105 = vmatpush1.msra.mxu0 0.0
  %106 = vmatprep.subr.mxu0 0.0
  %107 = vmatpush1.msra.mxu0 0.0
  %108 = vmatprep.subr.mxu0 0.0
  %109 = vmatpush1.msra.mxu0 0.0
  %110 = vmatprep.subr.mxu0 0.0
  %111 = vmatpush1.msra.mxu0 0.0
  %112 = vmatprep.mubr.f32.mxu0 0.0
  %113 = vmatmul.mubr.f32.gmra.mrb[0].mxu0 %v46
  %v114 = vpop.f32.mrb[0].mxu0
  %v115 = vadd.f32 %v42, %v114
  %v116 = vpop.f32.mrb[0].mxu0
  %117 = vdwg.mxu0
  %v118 = vmax.f32 %v115, 0.0
  %v119 = vld [vmem:[%s3] sm:$0xff]
  %v120 = vld [vmem:[%s3 + $0x8] sm:$0xff]
  %v121 = vld [vmem:[%s3 + $0x10] sm:$0xff]
  %v122 = vld [vmem:[%s3 + $0x18] sm:$0xff]
  %v123 = vld [vmem:[%s3 + $0x20] sm:$0xff]
  %v124 = vld [vmem:[%s3 + $0x28] sm:$0xff]
  %v125 = vld [vmem:[%s3 + $0x30] sm:$0xff]
  %v126 = vld [vmem:[%s3 + $0x38] sm:$0xff]
  %v127 = vld [vmem:[%s4] sm:$0x1]
  %v129 = vlaneseq
  %v130 = vshrl.u32 %v129, 7
  %v131 = vsub.s32 0, %v130
  %v132 = vrot.slane %v127, %v131
  %vm134 = vcmask 523264
  %v136 = vsel %vm134, %v118, 0
  %138 = vmatprep.subr.mxu0 0.0
  %139 = vmatpush1.msra.mxu0 %v119
  %140 = vmatprep.subr.mxu0 0.0
  %141 = vmatpush1.msra.mxu0 %v120
  %142 = vmatprep.subr.mxu0 0.0
  %143 = vmatpush1.msra.mxu0 %v121
  %144 = vmatprep.subr.mxu0 0.0
  %145 = vmatpush1.msra.mxu0 %v122
  %146 = vmatprep.subr.mxu0 0.0
  %147 = vmatpush1.msra.mxu0 %v123
  %148 = vmatprep.subr.mxu0 0.0
  %149 = vmatpush1.msra.mxu0 %v124
  %150 = vmatprep.subr.mxu0 0.0
  %151 = vmatpush1.msra.mxu0 %v125
  %152 = vmatprep.subr.mxu0 0.0
  %153 = vmatpush1.msra.mxu0 %v126
  %154 = vmatprep.subr.mxu0 0.0
  %155 = vmatpush1.msra.mxu0 0.0
  %156 = vmatprep.subr.mxu0 0.0
  %157 = vmatpush1.msra.mxu0 0.0
  %158 = vmatprep.subr.mxu0 0.0
  %159 = vmatpush1.msra.mxu0 0.0
  %160 = vmatprep.subr.mxu0 0.0
  %161 = vmatpush1.msra.mxu0 0.0
  %162 = vmatprep.subr.mxu0 0.0
  %163 = vmatpush1.msra.mxu0 0.0
  %164 = vmatprep.subr.mxu0 0.0
  %165 = vmatpush1.msra.mxu0 0.0
  %166 = vmatprep.subr.mxu0 0.0
  %167 = vmatpush1.msra.mxu0 0.0
  %168 = vmatprep.subr.mxu0 0.0
  %169 = vmatpush1.msra.mxu0 0.0
  %170 = vmatprep.subr.mxu0 0.0
  %171 = vmatpush1.msra.mxu0 0.0
  %172 = vmatprep.subr.mxu0 0.0
  %173 = vmatpush1.msra.mxu0 0.0
  %174 = vmatprep.subr.mxu0 0.0
  %175 = vmatpush1.msra.mxu0 0.0
  %176 = vmatprep.subr.mxu0 0.0
  %177 = vmatpush1.msra.mxu0 0.0
  %178 = vmatprep.subr.mxu0 0.0
  %179 = vmatpush1.msra.mxu0 0.0
  %180 = vmatprep.subr.mxu0 0.0
  %181 = vmatpush1.msra.mxu0 0.0
  %182 = vmatprep.subr.mxu0 0.0
  %183 = vmatpush1.msra.mxu0 0.0
  %184 = vmatprep.subr.mxu0 0.0
  %185 = vmatpush1.msra.mxu0 0.0
  %186 = vmatprep.subr.mxu0 0.0
  %187 = vmatpush1.msra.mxu0 0.0
  %188 = vmatprep.subr.mxu0 0.0
  %189 = vmatpush1.msra.mxu0 0.0
  %190 = vmatprep.subr.mxu0 0.0
  %191 = vmatpush1.msra.mxu0 0.0
  %192 = vmatprep.subr.mxu0 0.0
  %193 = vmatpush1.msra.mxu0 0.0
  %194 = vmatprep.subr.mxu0 0.0
  %195 = vmatpush1.msra.mxu0 0.0
  %196 = vmatprep.subr.mxu0 0.0
  %197 = vmatpush1.msra.mxu0 0.0
  %198 = vmatprep.subr.mxu0 0.0
  %199 = vmatpush1.msra.mxu0 0.0
  %200 = vmatprep.subr.mxu0 0.0
  %201 = vmatpush1.msra.mxu0 0.0
  %202 = vmatprep.mubr.f32.mxu0 0.0
  %203 = vmatmul.mubr.f32.gmra.mrb[0].mxu0 %v136
  %v204 = vpop.f32.mrb[0].mxu0
  %v205 = vadd.f32 %v132, %v204
  %v206 = vpop.f32.mrb[0].mxu0
  %207 = vdwg.mxu0
  %v208 = vmax.f32 %v205, 0.0
  %v209 = vld [vmem:[%s5] sm:$0xff]
  %v210 = vld [vmem:[%s5 + $0x8] sm:$0xff]
  %v211 = vld [vmem:[%s5 + $0x10] sm:$0xff]
  %v212 = vld [vmem:[%s5 + $0x18] sm:$0xff]
  %v213 = vld [vmem:[%s6] sm:$0x1]
  %v215 = vlaneseq
  %v216 = vshrl.u32 %v215, 7
  %v217 = vsub.s32 0, %v216
  %v218 = vrot.slane %v213, %v217
  %v221 = vsel %vm44, %v208, 0
  %223 = vmatprep.subr.mxu0 0.0
  %224 = vmatpush1.msra.mxu0 %v209
  %225 = vmatprep.subr.mxu0 0.0
  %226 = vmatpush1.msra.mxu0 %v210
  %227 = vmatprep.subr.mxu0 0.0
  %228 = vmatpush1.msra.mxu0 %v211
  %229 = vmatprep.subr.mxu0 0.0
  %230 = vmatpush1.msra.mxu0 %v212
  %231 = vmatprep.subr.mxu0 0.0
  %232 = vmatpush1.msra.mxu0 0.0
  %233 = vmatprep.subr.mxu0 0.0
  %234 = vmatpush1.msra.mxu0 0.0
  %235 = vmatprep.subr.mxu0 0.0
  %236 = vmatpush1.msra.mxu0 0.0
  %237 = vmatprep.subr.mxu0 0.0
  %238 = vmatpush1.msra.mxu0 0.0
  %239 = vmatprep.subr.mxu0 0.0
  %240 = vmatpush1.msra.mxu0 0.0
  %241 = vmatprep.subr.mxu0 0.0
  %242 = vmatpush1.msra.mxu0 0.0
  %243 = vmatprep.subr.mxu0 0.0
  %244 = vmatpush1.msra.mxu0 0.0
  %245 = vmatprep.subr.mxu0 0.0
  %246 = vmatpush1.msra.mxu0 0.0
  %247 = vmatprep.subr.mxu0 0.0
  %248 = vmatpush1.msra.mxu0 0.0
  %249 = vmatprep.subr.mxu0 0.0
  %250 = vmatpush1.msra.mxu0 0.0
  %251 = vmatprep.subr.mxu0 0.0
  %252 = vmatpush1.msra.mxu0 0.0
  %253 = vmatprep.subr.mxu0 0.0
  %254 = vmatpush1.msra.mxu0 0.0
  %255 = vmatprep.subr.mxu0 0.0
  %256 = vmatpush1.msra.mxu0 0.0
  %257 = vmatprep.subr.mxu0 0.0
  %258 = vmatpush1.msra.mxu0 0.0
  %259 = vmatprep.subr.mxu0 0.0
  %260 = vmatpush1.msra.mxu0 0.0
  %261 = vmatprep.subr.mxu0 0.0
  %262 = vmatpush1.msra.mxu0 0.0
  %263 = vmatprep.subr.mxu0 0.0
  %264 = vmatpush1.msra.mxu0 0.0
  %265 = vmatprep.subr.mxu0 0.0
  %266 = vmatpush1.msra.mxu0 0.0
  %267 = vmatprep.subr.mxu0 0.0
  %268 = vmatpush1.msra.mxu0 0.0
  %269 = vmatprep.subr.mxu0 0.0
  %270 = vmatpush1.msra.mxu0 0.0
  %271 = vmatprep.subr.mxu0 0.0
  %272 = vmatpush1.msra.mxu0 0.0
  %273 = vmatprep.subr.mxu0 0.0
  %274 = vmatpush1.msra.mxu0 0.0
  %275 = vmatprep.subr.mxu0 0.0
  %276 = vmatpush1.msra.mxu0 0.0
  %277 = vmatprep.subr.mxu0 0.0
  %278 = vmatpush1.msra.mxu0 0.0
  %279 = vmatprep.subr.mxu0 0.0
  %280 = vmatpush1.msra.mxu0 0.0
  %281 = vmatprep.subr.mxu0 0.0
  %282 = vmatpush1.msra.mxu0 0.0
  %283 = vmatprep.subr.mxu0 0.0
  %284 = vmatpush1.msra.mxu0 0.0
  %285 = vmatprep.subr.mxu0 0.0
  %286 = vmatpush1.msra.mxu0 0.0
  %287 = vmatprep.mubr.f32.mxu0 0.0
  %288 = vmatmul.mubr.f32.gmra.mrb[0].mxu0 %v221
  %v289 = vpop.f32.mrb[0].mxu0
  %v290 = vadd.f32 %v218, %v289
  %v291 = vpop.f32.mrb[0].mxu0
  %292 = vdwg.mxu0
  %v293 = vmax.f32 %v290, 0.0
  %v294 = vld [vmem:[%s7] sm:$0xff]
  %v295 = vld [vmem:[%s7 + $0x8] sm:$0xff]
  %v296 = vld [vmem:[%s8] sm:$0x1]
  %v298 = vlaneseq
  %v299 = vshrl.u32 %v298, 7
  %v300 = vsub.s32 0, %v299
  %v301 = vrot.slane %v296, %v300
  %vm303 = vcmask 130048
  %v305 = vsel %vm303, %v293, 0
  %307 = vmatprep.subr.mxu0 0.0
  %308 = vmatpush1.msra.mxu0 %v294
  %309 = vmatprep.subr.mxu0 0.0
  %310 = vmatpush1.msra.mxu0 %v295
  %311 = vmatprep.subr.mxu0 0.0
  %312 = vmatpush1.msra.mxu0 0.0
  %313 = vmatprep.subr.mxu0 0.0
  %314 = vmatpush1.msra.mxu0 0.0
  %315 = vmatprep.subr.mxu0 0.0
  %316 = vmatpush1.msra.mxu0 0.0
  %317 = vmatprep.subr.mxu0 0.0
  %318 = vmatpush1.msra.mxu0 0.0
  %319 = vmatprep.subr.mxu0 0.0
  %320 = vmatpush1.msra.mxu0 0.0
  %321 = vmatprep.subr.mxu0 0.0
  %322 = vmatpush1.msra.mxu0 0.0
  %323 = vmatprep.subr.mxu0 0.0
  %324 = vmatpush1.msra.mxu0 0.0
  %325 = vmatprep.subr.mxu0 0.0
  %326 = vmatpush1.msra.mxu0 0.0
  %327 = vmatprep.subr.mxu0 0.0
  %328 = vmatpush1.msra.mxu0 0.0
  %329 = vmatprep.subr.mxu0 0.0
  %330 = vmatpush1.msra.mxu0 0.0
  %331 = vmatprep.subr.mxu0 0.0
  %332 = vmatpush1.msra.mxu0 0.0
  %333 = vmatprep.subr.mxu0 0.0
  %334 = vmatpush1.msra.mxu0 0.0
  %335 = vmatprep.subr.mxu0 0.0
  %336 = vmatpush1.msra.mxu0 0.0
  %337 = vmatprep.subr.mxu0 0.0
  %338 = vmatpush1.msra.mxu0 0.0
  %339 = vmatprep.subr.mxu0 0.0
  %340 = vmatpush1.msra.mxu0 0.0
  %341 = vmatprep.subr.mxu0 0.0
  %342 = vmatpush1.msra.mxu0 0.0
  %343 = vmatprep.subr.mxu0 0.0
  %344 = vmatpush1.msra.mxu0 0.0
  %345 = vmatprep.subr.mxu0 0.0
  %346 = vmatpush1.msra.mxu0 0.0
  %347 = vmatprep.subr.mxu0 0.0
  %348 = vmatpush1.msra.mxu0 0.0
  %349 = vmatprep.subr.mxu0 0.0
  %350 = vmatpush1.msra.mxu0 0.0
  %351 = vmatprep.subr.mxu0 0.0
  %352 = vmatpush1.msra.mxu0 0.0
  %353 = vmatprep.subr.mxu0 0.0
  %354 = vmatpush1.msra.mxu0 0.0
  %355 = vmatprep.subr.mxu0 0.0
  %356 = vmatpush1.msra.mxu0 0.0
  %357 = vmatprep.subr.mxu0 0.0
  %358 = vmatpush1.msra.mxu0 0.0
  %359 = vmatprep.subr.mxu0 0.0
  %360 = vmatpush1.msra.mxu0 0.0
  %361 = vmatprep.subr.mxu0 0.0
  %362 = vmatpush1.msra.mxu0 0.0
  %363 = vmatprep.subr.mxu0 0.0
  %364 = vmatpush1.msra.mxu0 0.0
  %365 = vmatprep.subr.mxu0 0.0
  %366 = vmatpush1.msra.mxu0 0.0
  %367 = vmatprep.subr.mxu0 0.0
  %368 = vmatpush1.msra.mxu0 0.0
  %369 = vmatprep.subr.mxu0 0.0
  %370 = vmatpush1.msra.mxu0 0.0
  %371 = vmatprep.mubr.f32.mxu0 0.0
  %372 = vmatmul.mubr.f32.gmra.mrb[0].mxu0 %v305
  %v373 = vpop.f32.mrb[0].mxu0
  %v374 = vadd.f32 %v301, %v373
  %v375 = vpop.f32.mrb[0].mxu0
  %376 = vdwg.mxu0
  %vm377 = vcmask 31744
  %v378 = vsel %vm377, %v374, -inf
  %379 = vmax.xlane.f32.xlu0 %v378
  %v380 = vpop.xlane.xlu0 %379
  %v381 = vsub.f32 %v374, %v380
  %v382 = vmul.f32 %v381, 1.442695
  %v383 = vpow.pop %v382
  %v384 = vsel %vm377, %v383, 0.0
  %385 = vadd.xlane.f32.xlu0 %v384
  %v386 = vpop.xlane.xlu0 %385
  %v387 = vlog2.pop %v386
  %v388 = vmul.f32 %v387, 0.6931472
  %v389 = vsub.f32 %v381, %v388
  %390 = vst.msk [vmem:[%s9] sm:$0xff] %vm377, %v389
  // Predicated region
  $region38: #{tpu_custom_call.1} parent=0 // pred_check
    _
  $region39: #{tpu_custom_call.1} parent=0 // pred_check_branch
    %392 = sbr.rel (0) target = $region41
  $region40: #{tpu_custom_call.1} parent=0 // pred_region
    _
  $region41: #{tpu_custom_call.1} parent=0 // pred_fallthru
    _
  // Predicated region
  $region42: #{tpu_custom_call.1} parent=0 // pred_check
    _
  $region43: #{tpu_custom_call.1} parent=0 // pred_check_branch
    %394 = sbr.rel (0) target = $region45
  $region44: #{tpu_custom_call.1} parent=0 // pred_region
    _
  $region45: #{tpu_custom_call.1} parent=0 // pred_fallthru
    _

</llo_original>
